<compile_context>
chip_gen: v5e
topology: v5e:2x2
jax: 0.10.0
libtpu: 0.0.40
codegen_flags: <defaults>
</compile_context>

<pallas_src>
import functools

import jax
import jax.numpy as jnp
from jax.experimental import pallas as pl
from jax.experimental.pallas import tpu as pltpu


def _round_up(n, m):
    return ((n + m - 1) // m) * m


def _encoder_kernel(x_ref, w1_ref, b1_ref, wh_ref, bh_ref, out_ref, *, latent_dim):
    # Hidden layer: (TB, in) @ (in, H_pad) + (1, H_pad), ReLU.  f32 accumulate.
    x = x_ref[...].astype(w1_ref.dtype)
    h = jnp.dot(x, w1_ref[...], preferred_element_type=jnp.float32)
    h = jnp.maximum(h + b1_ref[...], 0.0)

    # Fused heads: single (TB, H_pad) @ (H_pad, OUT_pad) matmul.
    # Lanes [0:latent)           -> mu
    # Lanes [latent:2*latent)    -> 0.5*logvar (0.5 folded into weights/bias)
    # Lanes [2*latent:OUT_pad)   -> zero padding (dropped by the wrapper)
    head = jnp.dot(h.astype(wh_ref.dtype), wh_ref[...],
                   preferred_element_type=jnp.float32)
    head = head + bh_ref[...]

    lane = jax.lax.broadcasted_iota(jnp.int32, head.shape, 1)
    is_sigma = (lane >= latent_dim) & (lane < 2 * latent_dim)
    out = jnp.where(is_sigma, jnp.exp(head), head)

    out_ref[...] = out.astype(out_ref.dtype)


def prepare_encoder_params(w1, b1, w_mu, b_mu, w_lv, b_lv,
                           compute_dtype=jnp.float32):
    """One-time parameter prep (transpose, pad to lane-dense sizes, fuse heads).

    PyTorch-style inputs: w1 (hidden, in), w_mu/w_lv (latent, hidden),
    biases 1-D. Use bf16 compute_dtype on v6e/v7x for the fast MXU path.
    """
    hidden_dim, input_dim = w1.shape
    latent_dim = w_mu.shape[0]

    h_pad = _round_up(hidden_dim, 128)
    out_pad = _round_up(2 * latent_dim, 128)

    # First layer: (in, H_pad), zero-padded columns -> h padded lanes are 0.
    w1_t = jnp.zeros((input_dim, h_pad), compute_dtype)
    w1_t = w1_t.at[:, :hidden_dim].set(w1.T.astype(compute_dtype))
    b1_p = jnp.zeros((1, h_pad), jnp.float32)
    b1_p = b1_p.at[0, :hidden_dim].set(b1.astype(jnp.float32))

    # Fused heads: [mu | 0.5*logvar | zero-pad] along the output (lane) axis.
    w_heads = jnp.zeros((h_pad, out_pad), compute_dtype)
    w_heads = w_heads.at[:hidden_dim, :latent_dim].set(w_mu.T.astype(compute_dtype))
    w_heads = w_heads.at[:hidden_dim, latent_dim:2 * latent_dim].set(
        (0.5 * w_lv.T).astype(compute_dtype))
    b_heads = jnp.zeros((1, out_pad), jnp.float32)
    b_heads = b_heads.at[0, :latent_dim].set(b_mu.astype(jnp.float32))
    b_heads = b_heads.at[0, latent_dim:2 * latent_dim].set(
        (0.5 * b_lv).astype(jnp.float32))

    return {
        "w1_t": w1_t,
        "b1": b1_p,
        "w_heads": w_heads,
        "b_heads": b_heads,
        "latent_dim": int(latent_dim),
    }


@functools.partial(jax.jit, static_argnums=(5,))
def _encoder_forward_jit(x, w1_t, b1, w_heads, b_heads, latent_dim):
    B, input_dim = x.shape
    h_pad = w1_t.shape[1]
    out_pad = w_heads.shape[1]

    # Batch tile: single full-batch block for small B, 512-row tiles otherwise
    # (keeps weights VMEM-resident with constant index_map, fits v7x's 64 MiB).
    tb = 512 if B > 512 else B
    grid = (pl.cdiv(B, tb),)

    out = pl.pallas_call(
        functools.partial(_encoder_kernel, latent_dim=latent_dim),
        out_shape=jax.ShapeDtypeStruct((B, out_pad), x.dtype),
        grid_spec=pltpu.PrefetchScalarGridSpec(
            num_scalar_prefetch=0,
            grid=grid,
            in_specs=[
                pl.BlockSpec((tb, input_dim), lambda i: (i, 0)),
                pl.BlockSpec((input_dim, h_pad), lambda i: (0, 0)),
                pl.BlockSpec((1, h_pad), lambda i: (0, 0)),
                pl.BlockSpec((h_pad, out_pad), lambda i: (0, 0)),
                pl.BlockSpec((1, out_pad), lambda i: (0, 0)),
            ],
            out_specs=pl.BlockSpec((tb, out_pad), lambda i: (i, 0)),
        ),
        compiler_params=pltpu.CompilerParams(
            dimension_semantics=("parallel",)),
    )(x, w1_t, b1, w_heads, b_heads)

    mu = out[:, :latent_dim]
    sigma = out[:, latent_dim:2 * latent_dim]
    return mu, sigma


def encoder_forward(x, params):
    """x: (B, input_dim); params: output of prepare_encoder_params."""
    return _encoder_forward_jit(x, params["w1_t"], params["b1"],
                                params["w_heads"], params["b_heads"],
                                params["latent_dim"])


def _init_params(key, input_dim, hidden_dim, latent_dim, dtype=jnp.float32):
    """Deterministic synthetic init matching nn.Linear parameter shapes."""
    ks = jax.random.split(key, 6)
    w1 = jax.random.normal(ks[0], (hidden_dim, input_dim), dtype) * 0.1
    b1 = jax.random.normal(ks[1], (hidden_dim,), dtype) * 0.1
    w_mu = jax.random.normal(ks[2], (latent_dim, hidden_dim), dtype) * 0.1
    b_mu = jax.random.normal(ks[3], (latent_dim,), dtype) * 0.1
    w_lv = jax.random.normal(ks[4], (latent_dim, hidden_dim), dtype) * 0.1
    b_lv = jax.random.normal(ks[5], (latent_dim,), dtype) * 0.1
    return w1, b1, w_mu, b_mu, w_lv, b_lv


if __name__ == "__main__":
    # Small shapes consistent with the module's forward: x is (batch, input_dim).
    batch, input_dim, hidden_dim, latent_dim = 8, 32, 64, 16

    key = jax.random.PRNGKey(0)
    k_x, k_p = jax.random.split(key)
    x = jax.random.normal(k_x, (batch, input_dim), jnp.float32)
    w1, b1, w_mu, b_mu, w_lv, b_lv = _init_params(
        k_p, input_dim, hidden_dim, latent_dim)

    # One-time parameter prep (transpose / pad / fuse heads / fold 0.5).
    params = prepare_encoder_params(w1, b1, w_mu, b_mu, w_lv, b_lv,
                                    compute_dtype=jnp.float32)

    mu, sigma = encoder_forward(x, params)
    jax.block_until_ready((mu, sigma))

    # Reference check in plain JAX (same math as the PyTorch forward).
    h_ref = jnp.maximum(x @ w1.T + b1, 0.0)
    mu_ref = h_ref @ w_mu.T + b_mu
    sigma_ref = jnp.exp(0.5 * (h_ref @ w_lv.T + b_lv))
    assert mu.shape == (batch, latent_dim) and sigma.shape == (batch, latent_dim)
    assert jnp.allclose(mu, mu_ref, atol=1e-5, rtol=1e-5)
    assert jnp.allclose(sigma, sigma_ref, atol=1e-5, rtol=1e-5)

    print("KERNEL_OK")
</pallas_src>

<mosaic_0001>
module attributes {stable_mosaic.version = 11 : i64} {
  func.func @_encoder_kernel(%arg0: i32, %arg1: memref<8x32xf32, #tpu.memory_space<vmem>>, %arg2: memref<32x128xf32, #tpu.memory_space<vmem>>, %arg3: memref<1x128xf32, #tpu.memory_space<vmem>>, %arg4: memref<128x128xf32, #tpu.memory_space<vmem>>, %arg5: memref<1x128xf32, #tpu.memory_space<vmem>>, %arg6: memref<8x128xf32, #tpu.memory_space<vmem>>) attributes {dimension_semantics = [#tpu.dimension_semantics<parallel>], iteration_bounds = array<i64: 1>, scalar_prefetch = 0 : i64, scratch_operands = 0 : i64, tpu.core_type = #tpu.core_type<tc>, window_params = [{transform_indices = @transform_0, window_bounds = array<i64: 8, 32>}, {pipeline_mode = #tpu.pipeline_mode<synchronous>, transform_indices = @transform_1, window_bounds = array<i64: 32, 128>}, {pipeline_mode = #tpu.pipeline_mode<synchronous>, transform_indices = @transform_2, window_bounds = array<i64: 1, 128>}, {pipeline_mode = #tpu.pipeline_mode<synchronous>, transform_indices = @transform_3, window_bounds = array<i64: 128, 128>}, {pipeline_mode = #tpu.pipeline_mode<synchronous>, transform_indices = @transform_4, window_bounds = array<i64: 1, 128>}, {transform_indices = @transform_5, window_bounds = array<i64: 8, 128>}]} {
    %c0 = arith.constant 0 : index
    %c0_0 = arith.constant 0 : index
    %0 = vector.load %arg1[%c0, %c0_0] : memref<8x32xf32, #tpu.memory_space<vmem>>, vector<8x32xf32>
    %c0_1 = arith.constant 0 : index
    %c0_2 = arith.constant 0 : index
    %1 = vector.load %arg2[%c0_1, %c0_2] : memref<32x128xf32, #tpu.memory_space<vmem>>, vector<32x128xf32>
    %cst = arith.constant dense<0.000000e+00> : vector<8x128xf32>
    %2 = tpu.matmul %0, %1, %cst {dimension_numbers = #tpu.dot_dimension_numbers<[1], [0], [0], [1], [0, 0, 1, 1], [], []>} : vector<8x32xf32>, vector<32x128xf32>, vector<8x128xf32> -> vector<8x128xf32>
    %c0_3 = arith.constant 0 : index
    %c0_4 = arith.constant 0 : index
    %3 = vector.load %arg3[%c0_3, %c0_4] : memref<1x128xf32, #tpu.memory_space<vmem>>, vector<1x128xf32>
    %4 = vector.broadcast %3 : vector<1x128xf32> to vector<8x128xf32>
    %5 = arith.addf %2, %4 : vector<8x128xf32>
    %cst_5 = arith.constant 0.000000e+00 : f32
    %6 = vector.broadcast %cst_5 : f32 to vector<8x128xf32>
    %7 = arith.maximumf %5, %6 : vector<8x128xf32>
    %c0_6 = arith.constant 0 : index
    %c0_7 = arith.constant 0 : index
    %8 = vector.load %arg4[%c0_6, %c0_7] : memref<128x128xf32, #tpu.memory_space<vmem>>, vector<128x128xf32>
    %cst_8 = arith.constant dense<0.000000e+00> : vector<8x128xf32>
    %9 = tpu.matmul %7, %8, %cst_8 {dimension_numbers = #tpu.dot_dimension_numbers<[1], [0], [0], [1], [0, 0, 1, 1], [], []>} : vector<8x128xf32>, vector<128x128xf32>, vector<8x128xf32> -> vector<8x128xf32>
    %c0_9 = arith.constant 0 : index
    %c0_10 = arith.constant 0 : index
    %10 = vector.load %arg5[%c0_9, %c0_10] : memref<1x128xf32, #tpu.memory_space<vmem>>, vector<1x128xf32>
    %11 = vector.broadcast %10 : vector<1x128xf32> to vector<8x128xf32>
    %12 = arith.addf %9, %11 : vector<8x128xf32>
    %13 = tpu.iota {dimensions = array<i32: 1>} : vector<8x128xi32>
    %c16_i32 = arith.constant 16 : i32
    %14 = vector.broadcast %c16_i32 : i32 to vector<8x128xi32>
    %15 = arith.cmpi sge, %13, %14 : vector<8x128xi32>
    %c32_i32 = arith.constant 32 : i32
    %16 = vector.broadcast %c32_i32 : i32 to vector<8x128xi32>
    %17 = arith.cmpi slt, %13, %16 : vector<8x128xi32>
    %18 = arith.andi %15, %17 : vector<8x128xi1>
    %19 = math.exp %12 : vector<8x128xf32>
    %20 = arith.select %18, %19, %12 : vector<8x128xi1>, vector<8x128xf32>
    %c0_11 = arith.constant 0 : index
    %c0_12 = arith.constant 0 : index
    %21 = vector.load %arg6[%c0_11, %c0_12] : memref<8x128xf32, #tpu.memory_space<vmem>>, vector<8x128xf32>
    tpu.vector_store %arg6[%c0_11, %c0_12], %20 {strides = array<i32>} : memref<8x128xf32, #tpu.memory_space<vmem>>, vector<8x128xf32>,
    return
  }
  func.func @transform_0(%arg0: i32) -> (i32, i32) {
    %c0_i32 = arith.constant 0 : i32
    %c0_i32_0 = arith.constant 0 : i32
    return %arg0, %c0_i32 : i32, i32
  }
  func.func @transform_1(%arg0: i32) -> (i32, i32) {
    %c0_i32 = arith.constant 0 : i32
    %c0_i32_0 = arith.constant 0 : i32
    %c0_i32_1 = arith.constant 0 : i32
    return %c0_i32, %c0_i32_0 : i32, i32
  }
  func.func @transform_2(%arg0: i32) -> (i32, i32) {
    %c0_i32 = arith.constant 0 : i32
    %c0_i32_0 = arith.constant 0 : i32
    %c0_i32_1 = arith.constant 0 : i32
    return %c0_i32, %c0_i32_0 : i32, i32
  }
  func.func @transform_3(%arg0: i32) -> (i32, i32) {
    %c0_i32 = arith.constant 0 : i32
    %c0_i32_0 = arith.constant 0 : i32
    %c0_i32_1 = arith.constant 0 : i32
    return %c0_i32, %c0_i32_0 : i32, i32
  }
  func.func @transform_4(%arg0: i32) -> (i32, i32) {
    %c0_i32 = arith.constant 0 : i32
    %c0_i32_0 = arith.constant 0 : i32
    %c0_i32_1 = arith.constant 0 : i32
    return %c0_i32, %c0_i32_0 : i32, i32
  }
  func.func @transform_5(%arg0: i32) -> (i32, i32) {
    %c0_i32 = arith.constant 0 : i32
    %c0_i32_0 = arith.constant 0 : i32
    return %arg0, %c0_i32 : i32, i32
  }
}

</mosaic_0001>

<llo_original>
// kernel: _encoder_forward_jit.1
$region0: #{_encoder_forward_jit.1}
  #allocation0 [shape = 'u32[]', space=smem, size = 0x4, offset = 0x4, fixed_abs, tag = 'smem constant byte address 0x4 - core index']
  #allocation1 [shape = 'u32[72,128]{1,0:T(1,128)}', space=vmem, size = 0x9000, scoped, tag = 'internal scratch']
  %s0 = inlined_call_operand.hbm [shape: f32[8,32], index: 0, kind: input, shape index: {}]
  %s1 = inlined_call_operand.hbm [shape: f32[32,128], index: 1, kind: input, shape index: {}]
  %s2 = inlined_call_operand.vmem [shape: f32[1,128], index: 2, kind: input, shape index: {}]
  %s3 = inlined_call_operand.hbm [shape: f32[128,128], index: 3, kind: input, shape index: {}]
  %s4 = inlined_call_operand.vmem [shape: f32[1,128], index: 4, kind: input, shape index: {}]
  %s5 = inlined_call_operand.vmem [shape: f32[8,128], index: 5, kind: output, shape index: {}]
  %s6 = sld [smem:[#allocation0]]
  $region42: #{_encoder_forward_jit.1} parent=0
    _
  %s8 = ssub.s32 1, %s6
  %s9 = scalar_select 0, %s8, %s6
  $region1: #{_encoder_forward_jit.1} parent=0
    #allocation2 [shape = 'u8[4096]{0}', space=vmem, size = 0x1000, scoped, tag = 'input window, operand 0, single buffered']
    #allocation3 [shape = 's32[1]{0}', space=sflag, size = 0x4, scoped, tag = 'scoped memory for _encoder_forward_jit.1']
    #allocation4 [shape = 'u8[16384]{0}', space=vmem, size = 0x4000, scoped, tag = 'input window, operand 1, single buffered']
    #allocation5 [shape = 's32[1]{0}', space=sflag, size = 0x4, scoped, tag = 'scoped memory for _encoder_forward_jit.1']
    #allocation6 [shape = 'u8[65536]{0}', space=vmem, size = 0x10000, scoped, tag = 'input window, operand 3, single buffered']
    %10 = vsyncpa [#allocation3], 0
    %11 = vsyncpa [#allocation5], 0
    // Predicated region
    $region2: #{_encoder_forward_jit.1} parent=1 // pred_check
      _
    $region3: #{_encoder_forward_jit.1} parent=1 // pred_check_branch
      %13 = sbr.rel (0) target = $region5
    $region4: #{_encoder_forward_jit.1} parent=1 // pred_region
      %15 = vsyncadd [#allocation3], 0
      %s17 = sshll.u32 %s0, 4
      %s18 = int_to_ptr.hbm [resolvable:$true] %s17
      %s19 = sshll.u32 [#allocation2], 4
      %s20 = int_to_ptr.vmem [resolvable:$true] %s19
      %22 = dma.hbm_to_vmem [thread:$0]  %s18, 128, %s20, [#allocation3]
    $region5: #{_encoder_forward_jit.1} parent=1 // pred_fallthru
      _
    // Predicated region
    $region6: #{_encoder_forward_jit.1} parent=1 // pred_check
      _
    $region7: #{_encoder_forward_jit.1} parent=1 // pred_check_branch
      %24 = sbr.rel (0) target = $region9
    $region8: #{_encoder_forward_jit.1} parent=1 // pred_region
      %26 = vsyncadd [#allocation5], 0
      %s27 = sshll.u32 %s1, 4
      %s28 = int_to_ptr.hbm [resolvable:$true] %s27
      %s29 = sshll.u32 [#allocation4], 4
      %s30 = int_to_ptr.vmem [resolvable:$true] %s29
      %35 = dma.hbm_to_vmem [thread:$0]  %s28, 512, %s30, [#allocation5], 128, 128, 8
    $region9: #{_encoder_forward_jit.1} parent=1 // pred_fallthru
      _
    // Predicated region
    $region10: #{_encoder_forward_jit.1} parent=1 // pred_check
      _
    $region11: #{_encoder_forward_jit.1} parent=1 // pred_check_branch
      %37 = sbr.rel (0) target = $region13
    $region12: #{_encoder_forward_jit.1} parent=1 // pred_region
      _
    $region13: #{_encoder_forward_jit.1} parent=1 // pred_fallthru
      _
    // Predicated region
    $region14: #{_encoder_forward_jit.1} parent=1 // pred_check
      _
    $region15: #{_encoder_forward_jit.1} parent=1 // pred_check_branch
      %39 = sbr.rel (0) target = $region17
    $region16: #{_encoder_forward_jit.1} parent=1 // pred_region
      %41 = vsyncadd [#allocation5], 0
      %s42 = sshll.u32 %s3, 4
      %s43 = int_to_ptr.hbm [resolvable:$true] %s42
      %s44 = sshll.u32 [#allocation6], 4
      %s45 = int_to_ptr.vmem [resolvable:$true] %s44
      %50 = dma.hbm_to_vmem [thread:$0]  %s43, 2048, %s45, [#allocation5], 128, 128, 8
    $region17: #{_encoder_forward_jit.1} parent=1 // pred_fallthru
      _
    // Predicated region
    $region18: #{_encoder_forward_jit.1} parent=1 // pred_check
      _
    $region19: #{_encoder_forward_jit.1} parent=1 // pred_check_branch
      %52 = sbr.rel (0) target = $region21
    $region20: #{_encoder_forward_jit.1} parent=1 // pred_region
      _
    $region21: #{_encoder_forward_jit.1} parent=1 // pred_fallthru
      _
    // Predicated region
    $region22: #{_encoder_forward_jit.1} parent=1 // pred_check
      _
    $region23: #{_encoder_forward_jit.1} parent=1 // pred_check_branch
      %54 = sbr.rel (0) target = $region25
    $region24: #{_encoder_forward_jit.1} parent=1 // pred_region
      %56 = dma.done [#allocation3], 128
    $region25: #{_encoder_forward_jit.1} parent=1 // pred_fallthru
      _
    // Predicated region
    $region26: #{_encoder_forward_jit.1} parent=1 // pred_check
      _
    $region27: #{_encoder_forward_jit.1} parent=1 // pred_check_branch
      %58 = sbr.rel (0) target = $region29
    $region28: #{_encoder_forward_jit.1} parent=1 // pred_region
      %60 = dma.done [#allocation5], 512
    $region29: #{_encoder_forward_jit.1} parent=1 // pred_fallthru
      _
    // Predicated region
    $region30: #{_encoder_forward_jit.1} parent=1 // pred_check
      _
    $region31: #{_encoder_forward_jit.1} parent=1 // pred_check_branch
      %62 = sbr.rel (0) target = $region33
    $region32: #{_encoder_forward_jit.1} parent=1 // pred_region
      %64 = dma.done [#allocation5], 2048
    $region33: #{_encoder_forward_jit.1} parent=1 // pred_fallthru
      _
    %v65 = vld [vmem:[#allocation2] sm:$0xff]
    %v66 = vld [vmem:[#allocation4] sm:$0xff]
    %v67 = vld [vmem:[#allocation4 + $0x8] sm:$0xff]
    %v68 = vld [vmem:[#allocation4 + $0x10] sm:$0xff]
    %v69 = vld [vmem:[#allocation4 + $0x18] sm:$0xff]
    %v70 = vld [vmem:[%s2] sm:$0x1]
    %v72 = vperm.slane %v70, 0
    %vm74 = vcmask 261120
    %v76 = vsel %vm74, %v65, 0
    %78 = vmatpush.msra.mxu0 0.0
    %79 = vmatpush.msra.mxu0 0.0
    %80 = vmatpush.msra.mxu0 0.0
    %81 = vmatpush.msra.mxu0 0.0
    %82 = vmatpush.msra.mxu0 0.0
    %83 = vmatpush.msra.mxu0 0.0
    %84 = vmatpush.msra.mxu0 0.0
    %85 = vmatpush.msra.mxu0 0.0
    %86 = vmatpush.msra.mxu0 0.0
    %87 = vmatpush.msra.mxu0 0.0
    %88 = vmatpush.msra.mxu0 0.0
    %89 = vmatpush.msra.mxu0 0.0
    %90 = vmatpush.msra.mxu0 %v69
    %91 = vmatpush.msra.mxu0 %v68
    %92 = vmatpush.msra.mxu0 %v67
    %93 = vmatpush.msra.mxu0 %v66
    %94 = vmatmul.f32.gmra.mxu0 %v76
    %v95 = vpop.f32.mrf.mxu0
    %v96 = vadd.f32 %v72, %v95
    %97 = vdwg.mxu0
    %v98 = vmax.f32 %v96, 0.0
    %v99 = vld [vmem:[#allocation6] sm:$0xff]
    %v100 = vld [vmem:[#allocation6 + $0x8] sm:$0xff]
    %v101 = vld [vmem:[#allocation6 + $0x10] sm:$0xff]
    %v102 = vld [vmem:[#allocation6 + $0x18] sm:$0xff]
    %v103 = vld [vmem:[#allocation6 + $0x20] sm:$0xff]
    %v104 = vld [vmem:[#allocation6 + $0x28] sm:$0xff]
    %v105 = vld [vmem:[#allocation6 + $0x30] sm:$0xff]
    %v106 = vld [vmem:[#allocation6 + $0x38] sm:$0xff]
    %v107 = vld [vmem:[#allocation6 + $0x40] sm:$0xff]
    %v108 = vld [vmem:[#allocation6 + $0x48] sm:$0xff]
    %v109 = vld [vmem:[#allocation6 + $0x50] sm:$0xff]
    %v110 = vld [vmem:[#allocation6 + $0x58] sm:$0xff]
    %v111 = vld [vmem:[#allocation6 + $0x60] sm:$0xff]
    %v112 = vld [vmem:[#allocation6 + $0x68] sm:$0xff]
    %v113 = vld [vmem:[#allocation6 + $0x70] sm:$0xff]
    %v114 = vld [vmem:[#allocation6 + $0x78] sm:$0xff]
    %v115 = vld [vmem:[%s4] sm:$0x1]
    %v117 = vperm.slane %v115, 0
    %119 = vmatpush.msra.mxu0 %v114
    %120 = vmatpush.msra.mxu0 %v113
    %121 = vmatpush.msra.mxu0 %v112
    %122 = vmatpush.msra.mxu0 %v111
    %123 = vmatpush.msra.mxu0 %v110
    %124 = vmatpush.msra.mxu0 %v109
    %125 = vmatpush.msra.mxu0 %v108
    %126 = vmatpush.msra.mxu0 %v107
    %127 = vmatpush.msra.mxu0 %v106
    %128 = vmatpush.msra.mxu0 %v105
    %129 = vmatpush.msra.mxu0 %v104
    %130 = vmatpush.msra.mxu0 %v103
    %131 = vmatpush.msra.mxu0 %v102
    %132 = vmatpush.msra.mxu0 %v101
    %133 = vmatpush.msra.mxu0 %v100
    %134 = vmatpush.msra.mxu0 %v99
    %135 = vmatmul.f32.gmra.mxu0 %v98
    %v136 = vpop.f32.mrf.mxu0
    %v137 = vadd.f32 %v117, %v136
    %138 = vdwg.mxu0
    %v139 = vlaneseq
    %v140 = vand.u32 %v139, 127
    %vm141 = vcmp.ge.s32.totalorder %v140, 16
    %vm142 = vcmp.lt.s32.totalorder %v140, 32
    %vm143 = vmand %vm141, %vm142
    %v144 = vmul.f32 %v137, 1.442695
    %v145 = vpow.pop %v144
    %v146 = vsel %vm143, %v145, %v137
    %147 = vst [vmem:[%s5] sm:$0xff] %v146
    // Predicated region
    $region34: #{_encoder_forward_jit.1} parent=1 // pred_check
      _
    $region35: #{_encoder_forward_jit.1} parent=1 // pred_check_branch
      %149 = sbr.rel (0) target = $region37
    $region36: #{_encoder_forward_jit.1} parent=1 // pred_region
      _
    $region37: #{_encoder_forward_jit.1} parent=1 // pred_fallthru
      _
    // Predicated region
    $region38: #{_encoder_forward_jit.1} parent=1 // pred_check
      _
    $region39: #{_encoder_forward_jit.1} parent=1 // pred_check_branch
      %151 = sbr.rel (0) target = $region41
    $region40: #{_encoder_forward_jit.1} parent=1 // pred_region
      _
    $region41: #{_encoder_forward_jit.1} parent=1 // pred_fallthru
      _
    %152 = vsyncpa [#allocation3], 1
    %153 = vsyncpa [#allocation5], 1

</llo_original>
